<compile_context>
chip_gen: v6e
topology: v6e:2x2x1
jax: 0.10.0
libtpu: 0.0.40
codegen_flags: <defaults>
</compile_context>

<pallas_src>
import functools

import jax
import jax.numpy as jnp
from jax.experimental import pallas as pl
from jax.experimental.pallas import tpu as pltpu


def _regression_head_kernel(x_ref, w1_ref, b1_ref, w2_ref, b2_ref, o_ref):
    # P = rows packed into the lane axis, H = hidden, L = num_labels
    # x_ref:  (tm_p, P*H)   packed input rows
    # w1_ref: (P*H, P*H)    block-diagonal dense weight (in x out)
    # b1_ref: (1,  P*H)     lane-tiled dense bias
    # w2_ref: (P*H, P*L)    block-diagonal out_proj weight (in x out)
    # b2_ref: (1,  P*L)     lane-tiled out_proj bias
    # o_ref:  (tm_p, P*L)   packed output rows
    x = x_ref[...]
    h = jnp.dot(x, w1_ref[...], preferred_element_type=jnp.float32)
    h = jnp.tanh(h + b1_ref[...].astype(jnp.float32))
    # NOTE: with bf16 weights the post-tanh activations are downcast to bf16
    # for the second MXU matmul (acceptable for inference).
    out = jnp.dot(h.astype(w2_ref.dtype), w2_ref[...],
                  preferred_element_type=jnp.float32)
    out = out + b2_ref[...].astype(jnp.float32)
    o_ref[...] = out.astype(o_ref.dtype)


def _round_up(x, n):
    return ((x + n - 1) // n) * n


def _block_diag(w, p):
    """(in, out) -> (p*in, p*out) block-diagonal, same dtype."""
    if p == 1:
        return w
    return jnp.kron(jnp.eye(p, dtype=w.dtype), w)


def _pick_pack(m, hidden):
    """Largest P in {8,4,2} dividing m that keeps packed width small."""
    if hidden % 128 == 0:
        return 1                       # already lane-dense; packing only bloats W
    best = 1
    for p in (2, 4, 8):
        if m % p == 0 and p * hidden <= 512:
            best = p
    return best


def _num_tensorcores():
    try:
        kind = jax.devices()[0].device_kind.lower()
        return 2 if ("v7" in kind or "7x" in kind) else 1
    except Exception:
        return 1


@functools.partial(jax.jit, static_argnames=("tm",))
def regression_head(x, w_dense, b_dense, w_out, b_out, *, tm=None):
    """RegressionHead forward (eval mode).

    x: (..., H).  Linear weights are pre-transposed to (in, out) so the kernel
    computes x @ W + b.  Returns (..., L).
    `tm` (optional, static) is the row tile in *original* rows.
    """
    hidden = w_dense.shape[0]
    num_labels = w_out.shape[1]
    lead_shape = x.shape[:-1]
    x2d = x.reshape(-1, hidden)
    m = x2d.shape[0]
    num_tc = _num_tensorcores()

    # ---- lane-pack P rows per packed row (free, row-major metadata reshape) --
    p = _pick_pack(m, hidden)
    m_p = m // p
    kin = p * hidden
    kout = p * num_labels
    x_packed = x2d.reshape(m_p, kin)

    w1 = _block_diag(w_dense, p)                          # (kin, kin)
    w2 = _block_diag(w_out, p)                            # (kin, kout)
    b1 = jnp.tile(b_dense.reshape(1, hidden), (1, p))     # (1, kin)
    b2 = jnp.tile(b_out.reshape(1, num_labels), (1, p))   # (1, kout)

    # ---- packed-row tile selection (no padding, no divisibility demands) ----
    if tm is None:
        tm_p_req = 2048                                   # packed rows / tile
    else:
        tm_p_req = max(8, (max(tm, p) // p) // 8 * 8)
    if num_tc >= 2 and m_p >= 32:
        # v7x: aim for >= 4 grid steps so each TensorCore gets >= 2 and the
        # BlockSpec pipeline has something to overlap per core.
        tm_p_req = min(tm_p_req, _round_up(pl.cdiv(m_p, 4), 8))
    if m_p <= tm_p_req:
        tm_p = m_p             # one exact block (block dim == full array dim)
    else:
        tm_p = tm_p_req        # multiple of 8; ragged last block is masked
    grid = pl.cdiv(m_p, tm_p)

    act_bytes = jnp.dtype(x.dtype).itemsize
    w_bytes = jnp.dtype(w_dense.dtype).itemsize
    b_bytes = jnp.dtype(b_dense.dtype).itemsize
    cost = pl.CostEstimate(
        flops=2 * m_p * kin * (kin + kout),
        transcendentals=m_p * kin,
        bytes_accessed=(m_p * (kin + kout) * act_bytes
                        + (kin * kin + kin * kout) * w_bytes
                        + (kin + kout) * b_bytes),
    )

    out_packed = pl.pallas_call(
        _regression_head_kernel,
        out_shape=jax.ShapeDtypeStruct((m_p, kout), x.dtype),
        grid_spec=pl.GridSpec(
            grid=(grid,),
            in_specs=[
                pl.BlockSpec((tm_p, kin), lambda i: (i, 0)),   # packed x tile
                pl.BlockSpec((kin, kin), lambda i: (0, 0)),    # dense W (resident)
                pl.BlockSpec((1, kin), lambda i: (0, 0)),      # dense b
                pl.BlockSpec((kin, kout), lambda i: (0, 0)),   # out_proj W
                pl.BlockSpec((1, kout), lambda i: (0, 0)),     # out_proj b
            ],
            out_specs=pl.BlockSpec((tm_p, kout), lambda i: (i, 0)),
        ),
        compiler_params=pltpu.CompilerParams(
            dimension_semantics=("parallel",)),
        cost_estimate=cost,
    )(x_packed, w1, b1, w2, b2)

    out = out_packed.reshape(m, num_labels)                # free row-major unpack
    return out.reshape(*lead_shape, num_labels)


if __name__ == "__main__":
    # Small config consistent with the module: hidden_size=32, num_labels=4.
    batch, seq, hidden, num_labels = 2, 8, 32, 4

    key = jax.random.PRNGKey(0)
    kx, kw1, kb1, kw2, kb2 = jax.random.split(key, 5)

    x = jax.random.normal(kx, (batch, seq, hidden), dtype=jnp.float32)

    # PyTorch nn.Linear stores weight as (out, in); transpose to (in, out).
    w_dense_pt = jax.random.normal(kw1, (hidden, hidden), dtype=jnp.float32) * 0.05
    b_dense = jax.random.normal(kb1, (hidden,), dtype=jnp.float32) * 0.05
    w_out_pt = jax.random.normal(kw2, (num_labels, hidden), dtype=jnp.float32) * 0.05
    b_out = jax.random.normal(kb2, (num_labels,), dtype=jnp.float32) * 0.05
    w_dense = w_dense_pt.T   # (H, H)
    w_out = w_out_pt.T       # (H, L)

    def ref(xv):
        return jnp.tanh(xv @ w_dense_pt.T + b_dense) @ w_out_pt.T + b_out

    # 1) base case: m=16 rows -> P=8 lane packing, single exact block.
    y = regression_head(x, w_dense, b_dense, w_out, b_out)
    jax.block_until_ready(y)
    assert y.shape == (batch, seq, num_labels), y.shape
    assert jnp.allclose(y, ref(x), atol=1e-5, rtol=1e-5), float(
        jnp.max(jnp.abs(y - ref(x))))

    # 2) odd row count (m=21) -> P=1 fallback path, no padding anywhere.
    x_odd = jax.random.normal(kx, (3, 7, hidden), dtype=jnp.float32)
    y_odd = regression_head(x_odd, w_dense, b_dense, w_out, b_out)
    jax.block_until_ready(y_odd)
    assert y_odd.shape == (3, 7, num_labels), y_odd.shape
    assert jnp.allclose(y_odd, ref(x_odd), atol=1e-5, rtol=1e-5), float(
        jnp.max(jnp.abs(y_odd - ref(x_odd))))

    # 3) multi-step grid with a ragged (masked) last block: m=200 -> P=8,
    #    m_p=25 packed rows, tile=8 packed rows -> grid=4, last block partial.
    x_big = jax.random.normal(kx, (4, 50, hidden), dtype=jnp.float32)
    y_big = regression_head(x_big, w_dense, b_dense, w_out, b_out, tm=64)
    jax.block_until_ready(y_big)
    assert y_big.shape == (4, 50, num_labels), y_big.shape
    assert jnp.allclose(y_big, ref(x_big), atol=1e-5, rtol=1e-5), float(
        jnp.max(jnp.abs(y_big - ref(x_big))))

    # 4) bf16 streaming path (halves the dominant HBM stream on v6e/v7x).
    yb = regression_head(x_big.astype(jnp.bfloat16),
                         w_dense.astype(jnp.bfloat16),
                         b_dense.astype(jnp.bfloat16),
                         w_out.astype(jnp.bfloat16),
                         b_out.astype(jnp.bfloat16))
    jax.block_until_ready(yb)
    assert yb.shape == (4, 50, num_labels), yb.shape
    assert jnp.allclose(yb.astype(jnp.float32), ref(x_big), atol=5e-2, rtol=5e-2)

    print("KERNEL_OK")
</pallas_src>

<mosaic_0001>
module attributes {stable_mosaic.version = 11 : i64} {
  func.func @_regression_head_kernel(%arg0: i32, %arg1: memref<2x256xf32, #tpu.memory_space<vmem>>, %arg2: memref<256x256xf32, #tpu.memory_space<vmem>>, %arg3: memref<1x256xf32, #tpu.memory_space<vmem>>, %arg4: memref<256x32xf32, #tpu.memory_space<vmem>>, %arg5: memref<1x32xf32, #tpu.memory_space<vmem>>, %arg6: memref<2x32xf32, #tpu.memory_space<vmem>>) attributes {dimension_semantics = [#tpu.dimension_semantics<parallel>], iteration_bounds = array<i64: 1>, scalar_prefetch = 0 : i64, scratch_operands = 0 : i64, tpu.core_type = #tpu.core_type<tc>, window_params = [{transform_indices = @transform_0, window_bounds = array<i64: 2, 256>}, {pipeline_mode = #tpu.pipeline_mode<synchronous>, transform_indices = @transform_1, window_bounds = array<i64: 256, 256>}, {pipeline_mode = #tpu.pipeline_mode<synchronous>, transform_indices = @transform_2, window_bounds = array<i64: 1, 256>}, {pipeline_mode = #tpu.pipeline_mode<synchronous>, transform_indices = @transform_3, window_bounds = array<i64: 256, 32>}, {pipeline_mode = #tpu.pipeline_mode<synchronous>, transform_indices = @transform_4, window_bounds = array<i64: 1, 32>}, {transform_indices = @transform_5, window_bounds = array<i64: 2, 32>}]} {
    %c0 = arith.constant 0 : index
    %c0_0 = arith.constant 0 : index
    %0 = vector.load %arg1[%c0, %c0_0] : memref<2x256xf32, #tpu.memory_space<vmem>>, vector<2x256xf32>
    %c0_1 = arith.constant 0 : index
    %c0_2 = arith.constant 0 : index
    %1 = vector.load %arg2[%c0_1, %c0_2] : memref<256x256xf32, #tpu.memory_space<vmem>>, vector<256x256xf32>
    %cst = arith.constant dense<0.000000e+00> : vector<2x256xf32>
    %2 = tpu.matmul %0, %1, %cst {dimension_numbers = #tpu.dot_dimension_numbers<[1], [0], [0], [1], [0, 0, 1, 1], [], []>} : vector<2x256xf32>, vector<256x256xf32>, vector<2x256xf32> -> vector<2x256xf32>
    %c0_3 = arith.constant 0 : index
    %c0_4 = arith.constant 0 : index
    %3 = vector.load %arg3[%c0_3, %c0_4] : memref<1x256xf32, #tpu.memory_space<vmem>>, vector<1x256xf32>
    %4 = vector.broadcast %3 : vector<1x256xf32> to vector<2x256xf32>
    %5 = arith.addf %2, %4 : vector<2x256xf32>
    %6 = math.tanh %5 : vector<2x256xf32>
    %c0_5 = arith.constant 0 : index
    %c0_6 = arith.constant 0 : index
    %7 = vector.load %arg4[%c0_5, %c0_6] : memref<256x32xf32, #tpu.memory_space<vmem>>, vector<256x32xf32>
    %cst_7 = arith.constant dense<0.000000e+00> : vector<2x32xf32>
    %8 = tpu.matmul %6, %7, %cst_7 {dimension_numbers = #tpu.dot_dimension_numbers<[1], [0], [0], [1], [0, 0, 1, 1], [], []>} : vector<2x256xf32>, vector<256x32xf32>, vector<2x32xf32> -> vector<2x32xf32>
    %c0_8 = arith.constant 0 : index
    %c0_9 = arith.constant 0 : index
    %9 = vector.load %arg5[%c0_8, %c0_9] : memref<1x32xf32, #tpu.memory_space<vmem>>, vector<1x32xf32>
    %10 = vector.broadcast %9 : vector<1x32xf32> to vector<2x32xf32>
    %11 = arith.addf %8, %10 : vector<2x32xf32>
    %c0_10 = arith.constant 0 : index
    %c0_11 = arith.constant 0 : index
    %12 = vector.load %arg6[%c0_10, %c0_11] : memref<2x32xf32, #tpu.memory_space<vmem>>, vector<2x32xf32>
    tpu.vector_store %arg6[%c0_10, %c0_11], %11 {strides = array<i32>} : memref<2x32xf32, #tpu.memory_space<vmem>>, vector<2x32xf32>,
    return
  }
  func.func @transform_0(%arg0: i32) -> (i32, i32) {
    %c0_i32 = arith.constant 0 : i32
    %c0_i32_0 = arith.constant 0 : i32
    return %arg0, %c0_i32 : i32, i32
  }
  func.func @transform_1(%arg0: i32) -> (i32, i32) {
    %c0_i32 = arith.constant 0 : i32
    %c0_i32_0 = arith.constant 0 : i32
    %c0_i32_1 = arith.constant 0 : i32
    return %c0_i32, %c0_i32_0 : i32, i32
  }
  func.func @transform_2(%arg0: i32) -> (i32, i32) {
    %c0_i32 = arith.constant 0 : i32
    %c0_i32_0 = arith.constant 0 : i32
    %c0_i32_1 = arith.constant 0 : i32
    return %c0_i32, %c0_i32_0 : i32, i32
  }
  func.func @transform_3(%arg0: i32) -> (i32, i32) {
    %c0_i32 = arith.constant 0 : i32
    %c0_i32_0 = arith.constant 0 : i32
    %c0_i32_1 = arith.constant 0 : i32
    return %c0_i32, %c0_i32_0 : i32, i32
  }
  func.func @transform_4(%arg0: i32) -> (i32, i32) {
    %c0_i32 = arith.constant 0 : i32
    %c0_i32_0 = arith.constant 0 : i32
    %c0_i32_1 = arith.constant 0 : i32
    return %c0_i32, %c0_i32_0 : i32, i32
  }
  func.func @transform_5(%arg0: i32) -> (i32, i32) {
    %c0_i32 = arith.constant 0 : i32
    %c0_i32_0 = arith.constant 0 : i32
    return %arg0, %c0_i32 : i32, i32
  }
}

</mosaic_0001>

<llo_original>
// kernel: regression_head.1
$region0: #{regression_head.1}
  #allocation0 [shape = 'u32[]', space=smem, size = 0x4, offset = 0x4, fixed_abs, tag = 'smem constant byte address 0x4 - core index']
  #allocation1 [shape = 'u32[144,128]{1,0:T(1,128)}', space=vmem, size = 0x12000, scoped, tag = 'internal scratch']
  %s0 = inlined_call_operand.vmem [shape: f32[2,256], index: 0, kind: input, shape index: {}]
  %s1 = inlined_call_operand.vmem [shape: f32[256,256], index: 1, kind: input, shape index: {}]
  %s2 = inlined_call_operand.vmem [shape: f32[1,256], index: 2, kind: input, shape index: {}]
  %s3 = inlined_call_operand.vmem [shape: f32[256,32], index: 3, kind: input, shape index: {}]
  %s4 = inlined_call_operand.vmem [shape: f32[1,32], index: 4, kind: input, shape index: {}]
  %s5 = inlined_call_operand.vmem [shape: f32[2,32], index: 5, kind: output, shape index: {}]
  %s6 = sld [smem:[#allocation0]]
  $region30: #{regression_head.1} parent=0
    _
  %s8 = ssub.s32 1, %s6
  %s9 = scalar_select 0, %s8, %s6
  // Predicated region
  $region2: #{regression_head.1} parent=0 // pred_check
    _
  $region3: #{regression_head.1} parent=0 // pred_check_branch
    %11 = sbr.rel (0) target = $region5
  $region4: #{regression_head.1} parent=0 // pred_region
    _
  $region5: #{regression_head.1} parent=0 // pred_fallthru
    _
  // Predicated region
  $region6: #{regression_head.1} parent=0 // pred_check
    _
  $region7: #{regression_head.1} parent=0 // pred_check_branch
    %13 = sbr.rel (0) target = $region9
  $region8: #{regression_head.1} parent=0 // pred_region
    _
  $region9: #{regression_head.1} parent=0 // pred_fallthru
    _
  // Predicated region
  $region10: #{regression_head.1} parent=0 // pred_check
    _
  $region11: #{regression_head.1} parent=0 // pred_check_branch
    %15 = sbr.rel (0) target = $region13
  $region12: #{regression_head.1} parent=0 // pred_region
    _
  $region13: #{regression_head.1} parent=0 // pred_fallthru
    _
  // Predicated region
  $region14: #{regression_head.1} parent=0 // pred_check
    _
  $region15: #{regression_head.1} parent=0 // pred_check_branch
    %17 = sbr.rel (0) target = $region17
  $region16: #{regression_head.1} parent=0 // pred_region
    _
  $region17: #{regression_head.1} parent=0 // pred_fallthru
    _
  // Predicated region
  $region18: #{regression_head.1} parent=0 // pred_check
    _
  $region19: #{regression_head.1} parent=0 // pred_check_branch
    %19 = sbr.rel (0) target = $region21
  $region20: #{regression_head.1} parent=0 // pred_region
    _
  $region21: #{regression_head.1} parent=0 // pred_fallthru
    _
  %v20 = vld [vmem:[%s0] sm:$0xf]
  %v21 = vld [vmem:[%s1] sm:$0xff]
  %v22 = vld [vmem:[%s1 + $0x8] sm:$0xff]
  %v23 = vld [vmem:[%s1 + $0x10] sm:$0xff]
  %v24 = vld [vmem:[%s1 + $0x18] sm:$0xff]
  %v25 = vld [vmem:[%s1 + $0x20] sm:$0xff]
  %v26 = vld [vmem:[%s1 + $0x28] sm:$0xff]
  %v27 = vld [vmem:[%s1 + $0x30] sm:$0xff]
  %v28 = vld [vmem:[%s1 + $0x38] sm:$0xff]
  %v29 = vld [vmem:[%s1 + $0x40] sm:$0xff]
  %v30 = vld [vmem:[%s1 + $0x48] sm:$0xff]
  %v31 = vld [vmem:[%s1 + $0x50] sm:$0xff]
  %v32 = vld [vmem:[%s1 + $0x58] sm:$0xff]
  %v33 = vld [vmem:[%s1 + $0x60] sm:$0xff]
  %v34 = vld [vmem:[%s1 + $0x68] sm:$0xff]
  %v35 = vld [vmem:[%s1 + $0x70] sm:$0xff]
  %v36 = vld [vmem:[%s1 + $0x78] sm:$0xff]
  %v37 = vld [vmem:[%s1 + $0x80] sm:$0xff]
  %v38 = vld [vmem:[%s1 + $0x88] sm:$0xff]
  %v39 = vld [vmem:[%s1 + $0x90] sm:$0xff]
  %v40 = vld [vmem:[%s1 + $0x98] sm:$0xff]
  %v41 = vld [vmem:[%s1 + $0xa0] sm:$0xff]
  %v42 = vld [vmem:[%s1 + $0xa8] sm:$0xff]
  %v43 = vld [vmem:[%s1 + $0xb0] sm:$0xff]
  %v44 = vld [vmem:[%s1 + $0xb8] sm:$0xff]
  %v45 = vld [vmem:[%s1 + $0xc0] sm:$0xff]
  %v46 = vld [vmem:[%s1 + $0xc8] sm:$0xff]
  %v47 = vld [vmem:[%s1 + $0xd0] sm:$0xff]
  %v48 = vld [vmem:[%s1 + $0xd8] sm:$0xff]
  %v49 = vld [vmem:[%s1 + $0xe0] sm:$0xff]
  %v50 = vld [vmem:[%s1 + $0xe8] sm:$0xff]
  %v51 = vld [vmem:[%s1 + $0xf0] sm:$0xff]
  %v52 = vld [vmem:[%s1 + $0xf8] sm:$0xff]
  %v53 = vld [vmem:[%s1 + $0x100] sm:$0xff]
  %v54 = vld [vmem:[%s1 + $0x108] sm:$0xff]
  %v55 = vld [vmem:[%s1 + $0x110] sm:$0xff]
  %v56 = vld [vmem:[%s1 + $0x118] sm:$0xff]
  %v57 = vld [vmem:[%s1 + $0x120] sm:$0xff]
  %v58 = vld [vmem:[%s1 + $0x128] sm:$0xff]
  %v59 = vld [vmem:[%s1 + $0x130] sm:$0xff]
  %v60 = vld [vmem:[%s1 + $0x138] sm:$0xff]
  %v61 = vld [vmem:[%s1 + $0x140] sm:$0xff]
  %v62 = vld [vmem:[%s1 + $0x148] sm:$0xff]
  %v63 = vld [vmem:[%s1 + $0x150] sm:$0xff]
  %v64 = vld [vmem:[%s1 + $0x158] sm:$0xff]
  %v65 = vld [vmem:[%s1 + $0x160] sm:$0xff]
  %v66 = vld [vmem:[%s1 + $0x168] sm:$0xff]
  %v67 = vld [vmem:[%s1 + $0x170] sm:$0xff]
  %v68 = vld [vmem:[%s1 + $0x178] sm:$0xff]
  %v69 = vld [vmem:[%s1 + $0x180] sm:$0xff]
  %v70 = vld [vmem:[%s1 + $0x188] sm:$0xff]
  %v71 = vld [vmem:[%s1 + $0x190] sm:$0xff]
  %v72 = vld [vmem:[%s1 + $0x198] sm:$0xff]
  %v73 = vld [vmem:[%s1 + $0x1a0] sm:$0xff]
  %v74 = vld [vmem:[%s1 + $0x1a8] sm:$0xff]
  %v75 = vld [vmem:[%s1 + $0x1b0] sm:$0xff]
  %v76 = vld [vmem:[%s1 + $0x1b8] sm:$0xff]
  %v77 = vld [vmem:[%s1 + $0x1c0] sm:$0xff]
  %v78 = vld [vmem:[%s1 + $0x1c8] sm:$0xff]
  %v79 = vld [vmem:[%s1 + $0x1d0] sm:$0xff]
  %v80 = vld [vmem:[%s1 + $0x1d8] sm:$0xff]
  %v81 = vld [vmem:[%s1 + $0x1e0] sm:$0xff]
  %v82 = vld [vmem:[%s1 + $0x1e8] sm:$0xff]
  %v83 = vld [vmem:[%s1 + $0x1f0] sm:$0xff]
  %v84 = vld [vmem:[%s1 + $0x1f8] sm:$0xff]
  %v85 = vld [vmem:[%s2] sm:$0x3]
  %v87 = vlaneseq
  %v88 = vshrl.u32 %v87, 7
  %v89 = vsub.s32 0, %v88
  %v90 = vrot.slane %v85, %v89
  %v91 = vlaneseq
  %v92 = vshrl.u32 %v91, 7
  %v93 = vsub.s32 1, %v92
  %v94 = vrot.slane %v85, %v93
  %v99 = vunpack.c.l.s4 1983009808
  %v100 = vunpack.c.0.s8 %v99
  %v101 = vlaneseq
  %v102 = vshrl.u32 %v101, 7
  %v103 = vsub.s32 %v100, %v102
  %v104 = vrot.slane %v20, %v103
  %v105 = vcombine.high %v104, %v104
  %108 = vmatprep.subr.mxu0 %v52
  %109 = vmatpush1.msra.mxu0 %v51
  %110 = vmatprep.subr.mxu0 %v50
  %111 = vmatpush1.msra.mxu0 %v49
  %112 = vmatprep.subr.mxu0 %v48
  %113 = vmatpush1.msra.mxu0 %v47
  %114 = vmatprep.subr.mxu0 %v46
  %115 = vmatpush1.msra.mxu0 %v45
  %116 = vmatprep.subr.mxu0 %v44
  %117 = vmatpush1.msra.mxu0 %v43
  %118 = vmatprep.subr.mxu0 %v42
  %119 = vmatpush1.msra.mxu0 %v41
  %120 = vmatprep.subr.mxu0 %v40
  %121 = vmatpush1.msra.mxu0 %v39
  %122 = vmatprep.subr.mxu0 %v38
  %123 = vmatpush1.msra.mxu0 %v37
  %124 = vmatprep.subr.mxu0 %v36
  %125 = vmatpush1.msra.mxu0 %v35
  %126 = vmatprep.subr.mxu0 %v34
  %127 = vmatpush1.msra.mxu0 %v33
  %128 = vmatprep.subr.mxu0 %v32
  %129 = vmatpush1.msra.mxu0 %v31
  %130 = vmatprep.subr.mxu0 %v30
  %131 = vmatpush1.msra.mxu0 %v29
  %132 = vmatprep.subr.mxu0 %v28
  %133 = vmatpush1.msra.mxu0 %v27
  %134 = vmatprep.subr.mxu0 %v26
  %135 = vmatpush1.msra.mxu0 %v25
  %136 = vmatprep.subr.mxu0 %v24
  %137 = vmatpush1.msra.mxu0 %v23
  %138 = vmatprep.subr.mxu0 %v22
  %139 = vmatpush1.msra.mxu0 %v21
  %140 = vmatprep.subr.mxu0 %v84
  %141 = vmatpush2.msra.mxu0 %v83
  %142 = vmatprep.subr.mxu0 %v82
  %143 = vmatpush2.msra.mxu0 %v81
  %144 = vmatprep.subr.mxu0 %v80
  %145 = vmatpush2.msra.mxu0 %v79
  %146 = vmatprep.subr.mxu0 %v78
  %147 = vmatpush2.msra.mxu0 %v77
  %148 = vmatprep.subr.mxu0 %v76
  %149 = vmatpush2.msra.mxu0 %v75
  %150 = vmatprep.subr.mxu0 %v74
  %151 = vmatpush2.msra.mxu0 %v73
  %152 = vmatprep.subr.mxu0 %v72
  %153 = vmatpush2.msra.mxu0 %v71
  %154 = vmatprep.subr.mxu0 %v70
  %155 = vmatpush2.msra.mxu0 %v69
  %156 = vmatprep.subr.mxu0 %v68
  %157 = vmatpush2.msra.mxu0 %v67
  %158 = vmatprep.subr.mxu0 %v66
  %159 = vmatpush2.msra.mxu0 %v65
  %160 = vmatprep.subr.mxu0 %v64
  %161 = vmatpush2.msra.mxu0 %v63
  %162 = vmatprep.subr.mxu0 %v62
  %163 = vmatpush2.msra.mxu0 %v61
  %164 = vmatprep.subr.mxu0 %v60
  %165 = vmatpush2.msra.mxu0 %v59
  %166 = vmatprep.subr.mxu0 %v58
  %167 = vmatpush2.msra.mxu0 %v57
  %168 = vmatprep.subr.mxu0 %v56
  %169 = vmatpush2.msra.mxu0 %v55
  %170 = vmatprep.subr.mxu0 %v54
  %171 = vmatpush2.msra.mxu0 %v53
  %172 = vmatprep.mubr.f32.mxu0 %v105
  %173 = vmatmul.mubr.f32.gmra.mxu0 %v104
  %v174 = vpop.f32.mrf.mxu0
  %v175 = vadd.f32 %v90, %v174
  %v176 = vpop.f32.mrf.mxu0
  %v177 = vadd.f32 %v94, %v176
  %178 = vdwg.mxu0
  %v179 = vtanh.pop %v175
  %v180 = vtanh.pop %v177
  %v181 = vld [vmem:[%s3] sm:$0xff]
  %v182 = vld [vmem:[%s3 + $0x8] sm:$0xff]
  %v183 = vld [vmem:[%s3 + $0x10] sm:$0xff]
  %v184 = vld [vmem:[%s3 + $0x18] sm:$0xff]
  %v185 = vld [vmem:[%s3 + $0x20] sm:$0xff]
  %v186 = vld [vmem:[%s3 + $0x28] sm:$0xff]
  %v187 = vld [vmem:[%s3 + $0x30] sm:$0xff]
  %v188 = vld [vmem:[%s3 + $0x38] sm:$0xff]
  %v189 = vld [vmem:[%s3 + $0x40] sm:$0xff]
  %v190 = vld [vmem:[%s3 + $0x48] sm:$0xff]
  %v191 = vld [vmem:[%s3 + $0x50] sm:$0xff]
  %v192 = vld [vmem:[%s3 + $0x58] sm:$0xff]
  %v193 = vld [vmem:[%s3 + $0x60] sm:$0xff]
  %v194 = vld [vmem:[%s3 + $0x68] sm:$0xff]
  %v195 = vld [vmem:[%s3 + $0x70] sm:$0xff]
  %v196 = vld [vmem:[%s3 + $0x78] sm:$0xff]
  %v197 = vld [vmem:[%s3 + $0x80] sm:$0xff]
  %v198 = vld [vmem:[%s3 + $0x88] sm:$0xff]
  %v199 = vld [vmem:[%s3 + $0x90] sm:$0xff]
  %v200 = vld [vmem:[%s3 + $0x98] sm:$0xff]
  %v201 = vld [vmem:[%s3 + $0xa0] sm:$0xff]
  %v202 = vld [vmem:[%s3 + $0xa8] sm:$0xff]
  %v203 = vld [vmem:[%s3 + $0xb0] sm:$0xff]
  %v204 = vld [vmem:[%s3 + $0xb8] sm:$0xff]
  %v205 = vld [vmem:[%s3 + $0xc0] sm:$0xff]
  %v206 = vld [vmem:[%s3 + $0xc8] sm:$0xff]
  %v207 = vld [vmem:[%s3 + $0xd0] sm:$0xff]
  %v208 = vld [vmem:[%s3 + $0xd8] sm:$0xff]
  %v209 = vld [vmem:[%s3 + $0xe0] sm:$0xff]
  %v210 = vld [vmem:[%s3 + $0xe8] sm:$0xff]
  %v211 = vld [vmem:[%s3 + $0xf0] sm:$0xff]
  %v212 = vld [vmem:[%s3 + $0xf8] sm:$0xff]
  %v213 = vld [vmem:[%s4] sm:$0x1]
  %v215 = vlaneseq
  %v216 = vshrl.u32 %v215, 7
  %v217 = vsub.s32 0, %v216
  %v218 = vrot.slane %v213, %v217
  %220 = vmatprep.subr.mxu0 0.0
  %221 = vmatpush1.msra.mxu0 %v196
  %222 = vmatprep.subr.mxu0 0.0
  %223 = vmatpush1.msra.mxu0 %v195
  %224 = vmatprep.subr.mxu0 0.0
  %225 = vmatpush1.msra.mxu0 %v194
  %226 = vmatprep.subr.mxu0 0.0
  %227 = vmatpush1.msra.mxu0 %v193
  %228 = vmatprep.subr.mxu0 0.0
  %229 = vmatpush1.msra.mxu0 %v192
  %230 = vmatprep.subr.mxu0 0.0
  %231 = vmatpush1.msra.mxu0 %v191
  %232 = vmatprep.subr.mxu0 0.0
  %233 = vmatpush1.msra.mxu0 %v190
  %234 = vmatprep.subr.mxu0 0.0
  %235 = vmatpush1.msra.mxu0 %v189
  %236 = vmatprep.subr.mxu0 0.0
  %237 = vmatpush1.msra.mxu0 %v188
  %238 = vmatprep.subr.mxu0 0.0
  %239 = vmatpush1.msra.mxu0 %v187
  %240 = vmatprep.subr.mxu0 0.0
  %241 = vmatpush1.msra.mxu0 %v186
  %242 = vmatprep.subr.mxu0 0.0
  %243 = vmatpush1.msra.mxu0 %v185
  %244 = vmatprep.subr.mxu0 0.0
  %245 = vmatpush1.msra.mxu0 %v184
  %246 = vmatprep.subr.mxu0 0.0
  %247 = vmatpush1.msra.mxu0 %v183
  %248 = vmatprep.subr.mxu0 0.0
  %249 = vmatpush1.msra.mxu0 %v182
  %250 = vmatprep.subr.mxu0 0.0
  %251 = vmatpush1.msra.mxu0 %v181
  %252 = vmatprep.subr.mxu0 0.0
  %253 = vmatpush2.msra.mxu0 %v212
  %254 = vmatprep.subr.mxu0 0.0
  %255 = vmatpush2.msra.mxu0 %v211
  %256 = vmatprep.subr.mxu0 0.0
  %257 = vmatpush2.msra.mxu0 %v210
  %258 = vmatprep.subr.mxu0 0.0
  %259 = vmatpush2.msra.mxu0 %v209
  %260 = vmatprep.subr.mxu0 0.0
  %261 = vmatpush2.msra.mxu0 %v208
  %262 = vmatprep.subr.mxu0 0.0
  %263 = vmatpush2.msra.mxu0 %v207
  %264 = vmatprep.subr.mxu0 0.0
  %265 = vmatpush2.msra.mxu0 %v206
  %266 = vmatprep.subr.mxu0 0.0
  %267 = vmatpush2.msra.mxu0 %v205
  %268 = vmatprep.subr.mxu0 0.0
  %269 = vmatpush2.msra.mxu0 %v204
  %270 = vmatprep.subr.mxu0 0.0
  %271 = vmatpush2.msra.mxu0 %v203
  %272 = vmatprep.subr.mxu0 0.0
  %273 = vmatpush2.msra.mxu0 %v202
  %274 = vmatprep.subr.mxu0 0.0
  %275 = vmatpush2.msra.mxu0 %v201
  %276 = vmatprep.subr.mxu0 0.0
  %277 = vmatpush2.msra.mxu0 %v200
  %278 = vmatprep.subr.mxu0 0.0
  %279 = vmatpush2.msra.mxu0 %v199
  %280 = vmatprep.subr.mxu0 0.0
  %281 = vmatpush2.msra.mxu0 %v198
  %282 = vmatprep.subr.mxu0 0.0
  %283 = vmatpush2.msra.mxu0 %v197
  %284 = vmatprep.mubr.f32.mxu0 %v180
  %285 = vmatmul.mubr.f32.gmra.mxu0 %v179
  %v286 = vpop.f32.mrf.mxu0
  %v287 = vadd.f32 %v218, %v286
  %v288 = vpop.f32.mrf.mxu0
  %289 = vdwg.mxu0
  %vm290 = vcmask 254976
  %291 = vst.msk [vmem:[%s5] sm:$0x3] %vm290, %v287
  // Predicated region
  $region22: #{regression_head.1} parent=0 // pred_check
    _
  $region23: #{regression_head.1} parent=0 // pred_check_branch
    %293 = sbr.rel (0) target = $region25
  $region24: #{regression_head.1} parent=0 // pred_region
    _
  $region25: #{regression_head.1} parent=0 // pred_fallthru
    _
  // Predicated region
  $region26: #{regression_head.1} parent=0 // pred_check
    _
  $region27: #{regression_head.1} parent=0 // pred_check_branch
    %295 = sbr.rel (0) target = $region29
  $region28: #{regression_head.1} parent=0 // pred_region
    _
  $region29: #{regression_head.1} parent=0 // pred_fallthru
    _

</llo_original>
